<compile_context>
chip_gen: v7x
topology: tpu7x:2x2x1
jax: 0.10.0
libtpu: 0.0.40
codegen_flags: <defaults>
</compile_context>

<pallas_src>
import functools

import jax
import jax.numpy as jnp
from jax.experimental import pallas as pl
from jax.experimental.pallas import tpu as pltpu


def _round_up(x: int, m: int) -> int:
    return ((x + m - 1) // m) * m


def _to_i32(v: int) -> int:
    v &= 0xFFFFFFFF
    return v - (1 << 32) if v >= (1 << 31) else v


_FMIX_C1 = _to_i32(0x85EBCA6B)
_FMIX_C2 = _to_i32(0xC2B2AE35)


def _dropout_keep_mask(shape, row_off, col_off, num_cols, seed, rate):
    """Counter-based Bernoulli keep mask (murmur3 fmix32 of the global element index).

    Pure int32 jnp ops so it lowers both on Mosaic and in interpret mode
    (the stateful pltpu.prng_* primitives have no CPU lowering).
    Logical right shifts are emulated with arithmetic shift + mask.
    """
    # TODO(synk): this hash RNG is not bit-identical to torch's dropout RNG stream
    # (only the Bernoulli(p) marginal distribution matches, which is all dropout needs).
    rows = jax.lax.broadcasted_iota(jnp.int32, shape, 0) + row_off
    cols = jax.lax.broadcasted_iota(jnp.int32, shape, 1) + col_off
    z = rows * jnp.int32(num_cols) + cols
    z = z + jnp.int32(_to_i32(int(seed) * 2654435761 + 0x9E3779B9))
    z = z ^ ((z >> 16) & jnp.int32(0xFFFF))
    z = z * jnp.int32(_FMIX_C1)
    z = z ^ ((z >> 13) & jnp.int32(0x7FFFF))
    z = z * jnp.int32(_FMIX_C2)
    z = z ^ ((z >> 16) & jnp.int32(0xFFFF))
    u31 = (z >> 1) & jnp.int32(0x7FFFFFFF)          # uniform in [0, 2^31)
    thr = min(int(float(rate) * float(1 << 31)), (1 << 31) - 1)
    return u31 >= jnp.int32(thr)                    # P(keep) = 1 - rate


def _layer_norm(y, f_true, gamma, beta, eps=1e-5):
    """One-pass LayerNorm over the last axis (padded lanes of y are exactly zero)."""
    inv_f = 1.0 / float(f_true)
    mean = jnp.sum(y, axis=-1, keepdims=True) * inv_f
    mean_sq = jnp.sum(y * y, axis=-1, keepdims=True) * inv_f
    var = jnp.maximum(mean_sq - mean * mean, 0.0)
    inv = jax.lax.rsqrt(var + eps)
    return (y - mean) * inv * gamma + beta


# ----------------------------------------------------------------------------- kernels


def _tds_kernel_full(x_ref, w1_ref, w2_ref, params_ref, o_ref, *,
                     f_true, f_pad, row_tile, compute_dtype,
                     dropout_rate, use_dropout, seed):
    """Single-shot kernel: both (F_pad, F_pad) weights resident in VMEM."""
    x_in = x_ref[...]
    params = params_ref[...].astype(jnp.float32)          # (8, F_pad)
    b1 = params[0:1, :]
    b2 = params[1:2, :]
    gamma = params[2:3, :]
    beta = params[3:4, :]

    # fc_block: Linear -> ReLU -> (Dropout) -> Linear.  MXU in compute_dtype, f32 acc.
    h = jnp.dot(x_in.astype(compute_dtype), w1_ref[...],
                preferred_element_type=jnp.float32) + b1
    h = jnp.maximum(h, 0.0)

    if use_dropout:
        keep = _dropout_keep_mask(h.shape, pl.program_id(0) * row_tile, 0,
                                  f_pad, seed, dropout_rate)
        h = jnp.where(keep, h, 0.0)          # 1/(1-p) is folded into W2 in the wrapper

    y = jnp.dot(h.astype(compute_dtype), w2_ref[...],
                preferred_element_type=jnp.float32) + b2
    y = y + x_in.astype(jnp.float32)         # residual

    o_ref[...] = _layer_norm(y, f_true, gamma, beta).astype(o_ref.dtype)


def _tds_kernel_tiled(x_ref, w1_ref, b1_ref, w2_ref, params_ref, o_ref, acc_ref, *,
                      f_true, f_pad, row_tile, hid_tile, compute_dtype,
                      dropout_rate, use_dropout, seed):
    """Hidden-dim-tiled kernel: grid axis j over W1 column / W2 row blocks."""
    j = pl.program_id(1)

    @pl.when(j == 0)
    def _init():
        acc_ref[...] = jnp.zeros_like(acc_ref)

    x_in = x_ref[...]
    h = jnp.dot(x_in.astype(compute_dtype), w1_ref[...],
                preferred_element_type=jnp.float32) + b1_ref[...].astype(jnp.float32)
    h = jnp.maximum(h, 0.0)

    if use_dropout:
        keep = _dropout_keep_mask(h.shape, pl.program_id(0) * row_tile,
                                  j * hid_tile, f_pad, seed, dropout_rate)
        h = jnp.where(keep, h, 0.0)

    acc_ref[...] += jnp.dot(h.astype(compute_dtype), w2_ref[...],
                            preferred_element_type=jnp.float32)

    @pl.when(j == pl.num_programs(1) - 1)
    def _finalize():
        params = params_ref[...].astype(jnp.float32)
        b2 = params[1:2, :]
        gamma = params[2:3, :]
        beta = params[3:4, :]
        y = acc_ref[...] + b2 + x_in.astype(jnp.float32)
        o_ref[...] = _layer_norm(y, f_true, gamma, beta).astype(o_ref.dtype)


# ----------------------------------------------------------------------------- wrapper


def tds_fully_connected_block(x, w1, b1, w2, b2, gamma, beta, *,
                              dropout_rate=0.2, training=False, seed=0,
                              compute_dtype=jnp.bfloat16, hidden_tile=None):
    """x: (T, N, F). w1, w2: (F, F) in PyTorch (out, in) layout. b*, gamma, beta: (F,).

    `seed` is a static Python int used only when training=True (dropout active).
    """
    T, N, F = x.shape
    R = T * N
    F_pad = _round_up(F, 128)                       # lane-dense feature axis
    use_dropout = bool(training) and float(dropout_rate) > 0.0

    in_b = jnp.dtype(x.dtype).itemsize
    w_b = jnp.dtype(compute_dtype).itemsize

    # Generation-aware VMEM budget (v5e/v6e: 128 MiB, v7x: 64 MiB per TensorCore).
    try:
        vmem_cap = int(pltpu.get_tpu_info().vmem_capacity_bytes)
    except Exception:
        vmem_cap = 64 * 2**20                       # conservative (v7x-sized) default
    budget = int(vmem_cap * 0.70)

    # ---- Operand prep: feature-axis zero pad only (skipped when F % 128 == 0).
    #      Rows stay ragged; Pallas clips the last row block (no extra HBM traffic).
    x2d = x.reshape(R, F)
    if F_pad != F:
        x2d = jnp.pad(x2d, ((0, 0), (0, F_pad - F)))

    def prep_w(w, scale=1.0):
        wt = w.T.astype(jnp.float32)
        if scale != 1.0:
            wt = wt * jnp.float32(scale)
        if F_pad != F:
            wt = jnp.pad(wt, ((0, F_pad - F), (0, F_pad - F)))
        return wt.astype(compute_dtype)

    def prep_v(v):
        v = v.astype(jnp.float32)
        return jnp.pad(v, (0, F_pad - F)) if F_pad != F else v

    w1t = prep_w(w1)
    # Fold the 1/(1-p) dropout rescale into W2 so the kernel only masks.
    w2t = prep_w(w2, 1.0 / (1.0 - float(dropout_rate)) if use_dropout else 1.0)
    b1v, b2v = prep_v(b1), prep_v(b2)
    zero = jnp.zeros((F_pad,), jnp.float32)
    params = jnp.stack([b1v, b2v, prep_v(gamma), prep_v(beta),
                        zero, zero, zero, zero], axis=0)            # clean (8, F_pad) tile

    def const_spec(shape, index_map):
        # Constant-index blocks: single-buffer them to save VMEM when supported.
        try:
            return pl.BlockSpec(shape, index_map, pipeline_mode=pl.Buffered(1))
        except (TypeError, AttributeError):
            return pl.BlockSpec(shape, index_map)

    def pick_row_tile(est_fn):
        rt_ = 2048
        while rt_ > 256 and est_fn(rt_) > budget:
            rt_ -= 256                              # multiples of 256: full MXU M fill
        if R <= rt_:
            if R >= 512:
                rt_ = _round_up(pl.cdiv(R, 2), 256)  # >=2 steps -> megacore shardable
            else:
                rt_ = max(8, _round_up(R, 8))        # tiny problem: one exact-ish tile
        return rt_

    weights_bytes = 2 * F_pad * F_pad * w_b
    use_tiled = (hidden_tile is not None) or (weights_bytes > budget // 2)

    if not use_tiled:
        def est(rt_):
            return (4 * rt_ * F_pad * in_b          # x + out tiles, double-buffered
                    + weights_bytes                 # resident (single-buffered) weights
                    + 2 * 8 * F_pad * 4             # fused params block
                    + 3 * rt_ * F_pad * 4)          # f32 temporaries headroom

        rt = pick_row_tile(est)
        row_spec = pl.BlockSpec((rt, F_pad), lambda i: (i, 0))
        kernel = functools.partial(
            _tds_kernel_full, f_true=F, f_pad=F_pad, row_tile=rt,
            compute_dtype=compute_dtype, dropout_rate=float(dropout_rate),
            use_dropout=use_dropout, seed=int(seed))

        out2d = pl.pallas_call(
            kernel,
            out_shape=jax.ShapeDtypeStruct((R, F_pad), x.dtype),
            grid_spec=pltpu.PrefetchScalarGridSpec(
                num_scalar_prefetch=0,
                grid=(pl.cdiv(R, rt),),
                in_specs=[row_spec,
                          const_spec((F_pad, F_pad), lambda i: (0, 0)),
                          const_spec((F_pad, F_pad), lambda i: (0, 0)),
                          const_spec((8, F_pad), lambda i: (0, 0))],
                out_specs=row_spec),
            compiler_params=pltpu.CompilerParams(
                dimension_semantics=("parallel",),
                vmem_limit_bytes=int(min(vmem_cap, max(32 * 2**20, int(est(rt) * 1.4))))),
        )(x2d, w1t, w2t, params)
    else:
        # Hidden-dimension tiling: y += relu(x @ W1[:, j] + b1[j]) @ W2[j, :].
        # The hidden tile must divide F_pad exactly (ragged weight blocks would
        # inject garbage into the accumulation), and 128 always divides F_pad.
        if hidden_tile is not None:
            ht = int(hidden_tile)
            if ht % 128 != 0 or F_pad % ht != 0:
                raise ValueError("hidden_tile must be a multiple of 128 dividing the "
                                 "padded feature dim")
        else:
            ht = 128
            for cand in range(F_pad, 0, -128):
                if F_pad % cand == 0 and 4 * F_pad * cand * w_b <= budget // 2:
                    ht = cand
                    break

        def est(rt_):
            return (4 * rt_ * F_pad * in_b          # x + out tiles, double-buffered
                    + rt_ * F_pad * 4               # f32 accumulator scratch
                    + 4 * F_pad * ht * w_b          # W1 / W2 blocks, double-buffered
                    + 4 * ht * 4 + 2 * 8 * F_pad * 4
                    + rt_ * (ht + 2 * F_pad) * 4)   # f32 temporaries headroom

        rt = pick_row_tile(est)
        b1_2d = b1v.reshape(1, F_pad)
        kernel = functools.partial(
            _tds_kernel_tiled, f_true=F, f_pad=F_pad, row_tile=rt, hid_tile=ht,
            compute_dtype=compute_dtype, dropout_rate=float(dropout_rate),
            use_dropout=use_dropout, seed=int(seed))

        out2d = pl.pallas_call(
            kernel,
            out_shape=jax.ShapeDtypeStruct((R, F_pad), x.dtype),
            grid_spec=pltpu.PrefetchScalarGridSpec(
                num_scalar_prefetch=0,
                grid=(pl.cdiv(R, rt), F_pad // ht),
                in_specs=[pl.BlockSpec((rt, F_pad), lambda i, j: (i, 0)),
                          pl.BlockSpec((F_pad, ht), lambda i, j: (0, j)),
                          pl.BlockSpec((1, ht), lambda i, j: (0, j)),
                          pl.BlockSpec((ht, F_pad), lambda i, j: (j, 0)),
                          const_spec((8, F_pad), lambda i, j: (0, 0))],
                out_specs=pl.BlockSpec((rt, F_pad), lambda i, j: (i, 0)),
                scratch_shapes=[pltpu.VMEM((rt, F_pad), jnp.float32)]),
            compiler_params=pltpu.CompilerParams(
                dimension_semantics=("parallel", "arbitrary"),
                vmem_limit_bytes=int(min(vmem_cap, max(32 * 2**20, int(est(rt) * 1.4))))),
        )(x2d, w1t, b1_2d, w2t, params)

    if F_pad != F:
        out2d = out2d[:, :F]
    return out2d.reshape(T, N, F)


# ----------------------------------------------------------------------------- test


def reference(x, w1, b1, w2, b2, gamma, beta):
    h = jnp.maximum(x @ w1.T + b1, 0.0)
    y = h @ w2.T + b2 + x
    mean = jnp.mean(y, axis=-1, keepdims=True)
    var = jnp.mean((y - mean) ** 2, axis=-1, keepdims=True)
    return (y - mean) / jnp.sqrt(var + 1e-5) * gamma + beta


if __name__ == "__main__":
    key = jax.random.PRNGKey(0)

    def make_params(k, F):
        kw1, kb1, kw2, kb2 = jax.random.split(k, 4)
        bound = 1.0 / (F ** 0.5)
        w1 = jax.random.uniform(kw1, (F, F), minval=-bound, maxval=bound, dtype=jnp.float32)
        b1 = jax.random.uniform(kb1, (F,), minval=-bound, maxval=bound, dtype=jnp.float32)
        w2 = jax.random.uniform(kw2, (F, F), minval=-bound, maxval=bound, dtype=jnp.float32)
        b2 = jax.random.uniform(kb2, (F,), minval=-bound, maxval=bound, dtype=jnp.float32)
        gamma = jnp.ones((F,), jnp.float32)     # nn.LayerNorm default init
        beta = jnp.zeros((F,), jnp.float32)
        return w1, b1, w2, b2, gamma, beta

    k1, k2, k3, kx1, kx2, kx3 = jax.random.split(key, 6)

    # 1) lane-dense F (multiple of 128), bf16 MXU path, eval mode, single-shot kernel.
    T, N, F = 32, 8, 128
    x = jax.random.normal(kx1, (T, N, F), dtype=jnp.float32)
    p = make_params(k1, F)
    out = jax.block_until_ready(tds_fully_connected_block(x, *p))
    ref = reference(x, *p)
    assert out.shape == (T, N, F)
    assert jnp.allclose(out, ref, atol=2e-2, rtol=2e-2), "bf16 path mismatch vs reference"

    # 2) ragged shapes (F and T*N not multiples of the tile sizes), f32 compute.
    T2, N2, F2 = 10, 3, 96
    x2 = jax.random.normal(kx2, (T2, N2, F2), dtype=jnp.float32)
    p2 = make_params(k2, F2)
    out2 = jax.block_until_ready(
        tds_fully_connected_block(x2, *p2, compute_dtype=jnp.float32))
    ref2 = reference(x2, *p2)
    assert out2.shape == (T2, N2, F2)
    assert jnp.allclose(out2, ref2, atol=2e-3, rtol=2e-3), "padded f32 path mismatch"

    # 3) hidden-tiled fallback path (used automatically at large F), forced here.
    T3, N3, F3 = 8, 4, 256
    x3 = jax.random.normal(kx3, (T3, N3, F3), dtype=jnp.float32)
    p3 = make_params(k3, F3)
    out3 = jax.block_until_ready(
        tds_fully_connected_block(x3, *p3, compute_dtype=jnp.float32, hidden_tile=128))
    ref3 = reference(x3, *p3)
    assert out3.shape == (T3, N3, F3)
    assert jnp.allclose(out3, ref3, atol=2e-3, rtol=2e-3), "hidden-tiled path mismatch"

    # 4) training-mode dropout path (hash-based mask): runs, finite, and not a no-op.
    out4 = jax.block_until_ready(
        tds_fully_connected_block(x, *p, training=True, seed=123))
    assert out4.shape == (T, N, F)
    assert bool(jnp.all(jnp.isfinite(out4))), "training/dropout path produced non-finite values"
    assert not bool(jnp.allclose(out4, out)), "dropout appears to be a no-op in training mode"

    print("KERNEL_OK")
</pallas_src>

<mosaic_0001>
module attributes {stable_mosaic.version = 11 : i64} {
  func.func @_tds_kernel_full(%arg0: i32, %arg1: memref<256x128xf32, #tpu.memory_space<vmem>>, %arg2: memref<128x128xbf16, #tpu.memory_space<vmem>>, %arg3: memref<128x128xbf16, #tpu.memory_space<vmem>>, %arg4: memref<8x128xf32, #tpu.memory_space<vmem>>, %arg5: memref<256x128xf32, #tpu.memory_space<vmem>>) attributes {dimension_semantics = [#tpu.dimension_semantics<parallel>], iteration_bounds = array<i64: 1>, scalar_prefetch = 0 : i64, scratch_operands = 0 : i64, tpu.core_type = #tpu.core_type<tc>, window_params = [{transform_indices = @transform_0, window_bounds = array<i64: 256, 128>}, {pipeline_mode = #tpu.pipeline_mode<synchronous>, transform_indices = @transform_1, window_bounds = array<i64: 128, 128>}, {pipeline_mode = #tpu.pipeline_mode<synchronous>, transform_indices = @transform_2, window_bounds = array<i64: 128, 128>}, {pipeline_mode = #tpu.pipeline_mode<synchronous>, transform_indices = @transform_3, window_bounds = array<i64: 8, 128>}, {transform_indices = @transform_4, window_bounds = array<i64: 256, 128>}]} {
    %c0 = arith.constant 0 : index
    %c0_0 = arith.constant 0 : index
    %0 = vector.load %arg1[%c0, %c0_0] : memref<256x128xf32, #tpu.memory_space<vmem>>, vector<256x128xf32>
    %c0_1 = arith.constant 0 : index
    %c0_2 = arith.constant 0 : index
    %1 = vector.load %arg4[%c0_1, %c0_2] : memref<8x128xf32, #tpu.memory_space<vmem>>, vector<8x128xf32>
    %2 = vector.extract_strided_slice %1 {offsets = [0, 0], sizes = [1, 128], strides = [1, 1]} : vector<8x128xf32> to vector<1x128xf32>
    %3 = vector.extract_strided_slice %1 {offsets = [1, 0], sizes = [1, 128], strides = [1, 1]} : vector<8x128xf32> to vector<1x128xf32>
    %4 = vector.extract_strided_slice %1 {offsets = [2, 0], sizes = [1, 128], strides = [1, 1]} : vector<8x128xf32> to vector<1x128xf32>
    %5 = vector.extract_strided_slice %1 {offsets = [3, 0], sizes = [1, 128], strides = [1, 1]} : vector<8x128xf32> to vector<1x128xf32>
    %6 = arith.truncf %0 : vector<256x128xf32> to vector<256x128xbf16>
    %c0_3 = arith.constant 0 : index
    %c0_4 = arith.constant 0 : index
    %7 = vector.load %arg2[%c0_3, %c0_4] : memref<128x128xbf16, #tpu.memory_space<vmem>>, vector<128x128xbf16>
    %cst = arith.constant dense<0.000000e+00> : vector<256x128xf32>
    %8 = tpu.matmul %6, %7, %cst {dimension_numbers = #tpu.dot_dimension_numbers<[1], [0], [0], [1], [0, 0, 1, 1], [], []>} : vector<256x128xbf16>, vector<128x128xbf16>, vector<256x128xf32> -> vector<256x128xf32>
    %9 = vector.broadcast %2 : vector<1x128xf32> to vector<256x128xf32>
    %10 = arith.addf %8, %9 : vector<256x128xf32>
    %cst_5 = arith.constant 0.000000e+00 : f32
    %11 = vector.broadcast %cst_5 : f32 to vector<256x128xf32>
    %12 = arith.maximumf %10, %11 : vector<256x128xf32>
    %13 = arith.truncf %12 : vector<256x128xf32> to vector<256x128xbf16>
    %c0_6 = arith.constant 0 : index
    %c0_7 = arith.constant 0 : index
    %14 = vector.load %arg3[%c0_6, %c0_7] : memref<128x128xbf16, #tpu.memory_space<vmem>>, vector<128x128xbf16>
    %cst_8 = arith.constant dense<0.000000e+00> : vector<256x128xf32>
    %15 = tpu.matmul %13, %14, %cst_8 {dimension_numbers = #tpu.dot_dimension_numbers<[1], [0], [0], [1], [0, 0, 1, 1], [], []>} : vector<256x128xbf16>, vector<128x128xbf16>, vector<256x128xf32> -> vector<256x128xf32>
    %16 = vector.broadcast %3 : vector<1x128xf32> to vector<256x128xf32>
    %17 = arith.addf %15, %16 : vector<256x128xf32>
    %18 = arith.addf %17, %0 : vector<256x128xf32>
    %cst_9 = arith.constant dense<0.000000e+00> : vector<256xf32>
    %19 = vector.multi_reduction <add>, %18, %cst_9 [1] : vector<256x128xf32> to vector<256xf32>
    %20 = vector.shape_cast %19 : vector<256xf32> to vector<256x1xf32>
    %cst_10 = arith.constant 7.812500e-03 : f32
    %21 = vector.broadcast %cst_10 : f32 to vector<256x1xf32>
    %22 = arith.mulf %20, %21 : vector<256x1xf32>
    %23 = arith.mulf %18, %18 : vector<256x128xf32>
    %cst_11 = arith.constant dense<0.000000e+00> : vector<256xf32>
    %24 = vector.multi_reduction <add>, %23, %cst_11 [1] : vector<256x128xf32> to vector<256xf32>
    %25 = vector.shape_cast %24 : vector<256xf32> to vector<256x1xf32>
    %cst_12 = arith.constant 7.812500e-03 : f32
    %26 = vector.broadcast %cst_12 : f32 to vector<256x1xf32>
    %27 = arith.mulf %25, %26 : vector<256x1xf32>
    %28 = arith.mulf %22, %22 : vector<256x1xf32>
    %29 = arith.subf %27, %28 : vector<256x1xf32>
    %cst_13 = arith.constant 0.000000e+00 : f32
    %30 = vector.broadcast %cst_13 : f32 to vector<256x1xf32>
    %31 = arith.maximumf %29, %30 : vector<256x1xf32>
    %cst_14 = arith.constant 9.99999974E-6 : f32
    %32 = vector.broadcast %cst_14 : f32 to vector<256x1xf32>
    %33 = arith.addf %31, %32 : vector<256x1xf32>
    %34 = math.rsqrt %33 : vector<256x1xf32>
    %35 = vector.broadcast %22 : vector<256x1xf32> to vector<256x128xf32>
    %36 = arith.subf %18, %35 : vector<256x128xf32>
    %37 = vector.broadcast %34 : vector<256x1xf32> to vector<256x128xf32>
    %38 = arith.mulf %36, %37 : vector<256x128xf32>
    %39 = vector.broadcast %4 : vector<1x128xf32> to vector<256x128xf32>
    %40 = arith.mulf %38, %39 : vector<256x128xf32>
    %41 = vector.broadcast %5 : vector<1x128xf32> to vector<256x128xf32>
    %42 = arith.addf %40, %41 : vector<256x128xf32>
    %c0_15 = arith.constant 0 : index
    %c0_16 = arith.constant 0 : index
    %43 = vector.load %arg5[%c0_15, %c0_16] : memref<256x128xf32, #tpu.memory_space<vmem>>, vector<256x128xf32>
    tpu.vector_store %arg5[%c0_15, %c0_16], %42 {strides = array<i32>} : memref<256x128xf32, #tpu.memory_space<vmem>>, vector<256x128xf32>,
    return
  }
  func.func @transform_0(%arg0: i32) -> (i32, i32) {
    %c0_i32 = arith.constant 0 : i32
    %c0_i32_0 = arith.constant 0 : i32
    return %arg0, %c0_i32 : i32, i32
  }
  func.func @transform_1(%arg0: i32) -> (i32, i32) {
    %c0_i32 = arith.constant 0 : i32
    %c0_i32_0 = arith.constant 0 : i32
    %c0_i32_1 = arith.constant 0 : i32
    return %c0_i32, %c0_i32_0 : i32, i32
  }
  func.func @transform_2(%arg0: i32) -> (i32, i32) {
    %c0_i32 = arith.constant 0 : i32
    %c0_i32_0 = arith.constant 0 : i32
    %c0_i32_1 = arith.constant 0 : i32
    return %c0_i32, %c0_i32_0 : i32, i32
  }
  func.func @transform_3(%arg0: i32) -> (i32, i32) {
    %c0_i32 = arith.constant 0 : i32
    %c0_i32_0 = arith.constant 0 : i32
    %c0_i32_1 = arith.constant 0 : i32
    return %c0_i32, %c0_i32_0 : i32, i32
  }
  func.func @transform_4(%arg0: i32) -> (i32, i32) {
    %c0_i32 = arith.constant 0 : i32
    %c0_i32_0 = arith.constant 0 : i32
    return %arg0, %c0_i32 : i32, i32
  }
}

</mosaic_0001>

<llo_original>
// kernel: tpu_custom_call.1
$region0: #{tpu_custom_call.1}
  #allocation0 [shape = 'u32[]', space=smem, size = 0x4, offset = 0x4, fixed_abs, tag = 'smem constant byte address 0x4 - core index']
  #allocation1 [shape = 'u32[144,128]{1,0:T(1,128)}', space=vmem, size = 0x12000, scoped, tag = 'internal scratch']
  %s0 = inlined_call_operand.hbm [shape: f32[256,128], index: 0, kind: input, shape index: {}]
  %s1 = inlined_call_operand.hbm [shape: bf16[128,128], index: 1, kind: input, shape index: {}]
  %s2 = inlined_call_operand.hbm [shape: bf16[128,128], index: 2, kind: input, shape index: {}]
  %s3 = inlined_call_operand.vmem [shape: f32[8,128], index: 3, kind: input, shape index: {}]
  %s4 = inlined_call_operand.hbm [shape: f32[256,128], index: 4, kind: output, shape index: {}]
  %s5 = sld [smem:[#allocation0]]
  $region38: #{tpu_custom_call.1} parent=0
    _
  %s7 = ssub.s32 1, %s5
  %s8 = scalar_select 0, %s7, %s5
  $region1: #{tpu_custom_call.1} parent=0
    #allocation2 [shape = 'u8[131072]{0}', space=vmem, size = 0x20000, scoped, tag = 'input window, operand 0, single buffered']
    #allocation3 [shape = 's32[1]{0}', space=sflag, size = 0x4, scoped, tag = 'scoped memory for tpu_custom_call.1']
    #allocation4 [shape = 's32[1]{0}', space=sflag, size = 0x4, scoped, tag = 'scoped memory for tpu_custom_call.1']
    #allocation5 [shape = 'u8[32768]{0}', space=vmem, size = 0x8000, scoped, tag = 'input window, operand 1, single buffered']
    #allocation6 [shape = 's32[1]{0}', space=sflag, size = 0x4, scoped, tag = 'scoped memory for tpu_custom_call.1']
    #allocation7 [shape = 'u8[32768]{0}', space=vmem, size = 0x8000, scoped, tag = 'input window, operand 2, single buffered']
    #allocation8 [shape = 'u8[131072]{0}', space=vmem, size = 0x20000, scoped, tag = 'output window, operand 0, single buffered']
    %9 = vsyncpa [#allocation3], 0
    %10 = vsyncpa [#allocation6], 0
    %11 = vsyncpa [#allocation4], 0
    // Predicated region
    $region2: #{tpu_custom_call.1} parent=1 // pred_check
      _
    $region3: #{tpu_custom_call.1} parent=1 // pred_check_branch
      %13 = sbr.rel (0) target = $region5
    $region4: #{tpu_custom_call.1} parent=1 // pred_region
      %s15 = ssub.s32 4096, 4096
      %16 = vsyncadd [#allocation3], %s15
      %s17 = sshll.u32 [#allocation2], 4
      %s18 = int_to_ptr.vmem [resolvable:$true] %s17
      %23 = dma.hbm_to_vmem [thread:$0]  %s0, 4096, %s18, [#allocation3], 128, 128, 8
    $region5: #{tpu_custom_call.1} parent=1 // pred_fallthru
      _
    // Predicated region
    $region6: #{tpu_custom_call.1} parent=1 // pred_check
      _
    $region7: #{tpu_custom_call.1} parent=1 // pred_check_branch
      %25 = sbr.rel (0) target = $region9
    $region8: #{tpu_custom_call.1} parent=1 // pred_region
      %s27 = ssub.s32 1024, 1024
      %28 = vsyncadd [#allocation6], %s27
      %s29 = sshll.u32 [#allocation5], 4
      %s30 = int_to_ptr.vmem [resolvable:$true] %s29
      %35 = dma.hbm_to_vmem [thread:$0]  %s1, 1024, %s30, [#allocation6], 64, 64, 4
    $region9: #{tpu_custom_call.1} parent=1 // pred_fallthru
      _
    // Predicated region
    $region10: #{tpu_custom_call.1} parent=1 // pred_check
      _
    $region11: #{tpu_custom_call.1} parent=1 // pred_check_branch
      %37 = sbr.rel (0) target = $region13
    $region12: #{tpu_custom_call.1} parent=1 // pred_region
      %s39 = ssub.s32 1024, 1024
      %40 = vsyncadd [#allocation6], %s39
      %s41 = sshll.u32 [#allocation7], 4
      %s42 = int_to_ptr.vmem [resolvable:$true] %s41
      %47 = dma.hbm_to_vmem [thread:$0]  %s2, 1024, %s42, [#allocation6], 64, 64, 4
    $region13: #{tpu_custom_call.1} parent=1 // pred_fallthru
      _
    // Predicated region
    $region14: #{tpu_custom_call.1} parent=1 // pred_check
      _
    $region15: #{tpu_custom_call.1} parent=1 // pred_check_branch
      %49 = sbr.rel (0) target = $region17
    $region16: #{tpu_custom_call.1} parent=1 // pred_region
      _
    $region17: #{tpu_custom_call.1} parent=1 // pred_fallthru
      _
    // Predicated region
    $region18: #{tpu_custom_call.1} parent=1 // pred_check
      _
    $region19: #{tpu_custom_call.1} parent=1 // pred_check_branch
      %51 = sbr.rel (0) target = $region21
    $region20: #{tpu_custom_call.1} parent=1 // pred_region
      %52 = dma.done [#allocation3], 4096
    $region21: #{tpu_custom_call.1} parent=1 // pred_fallthru
      _
    // Predicated region
    $region22: #{tpu_custom_call.1} parent=1 // pred_check
      _
    $region23: #{tpu_custom_call.1} parent=1 // pred_check_branch
      %54 = sbr.rel (0) target = $region25
    $region24: #{tpu_custom_call.1} parent=1 // pred_region
      %55 = dma.done [#allocation6], 1024
    $region25: #{tpu_custom_call.1} parent=1 // pred_fallthru
      _
    // Predicated region
    $region26: #{tpu_custom_call.1} parent=1 // pred_check
      _
    $region27: #{tpu_custom_call.1} parent=1 // pred_check_branch
      %57 = sbr.rel (0) target = $region29
    $region28: #{tpu_custom_call.1} parent=1 // pred_region
      %58 = dma.done [#allocation6], 1024
    $region29: #{tpu_custom_call.1} parent=1 // pred_fallthru
      _
    %v60 = vld [vmem:[#allocation2] sm:$0xff]
    %v61 = vld [vmem:[#allocation2 + $0x8] sm:$0xff]
    %v62 = vld [vmem:[#allocation2 + $0x10] sm:$0xff]
    %v63 = vld [vmem:[#allocation2 + $0x18] sm:$0xff]
    %v64 = vld [vmem:[#allocation2 + $0x20] sm:$0xff]
    %v65 = vld [vmem:[#allocation2 + $0x28] sm:$0xff]
    %v66 = vld [vmem:[#allocation2 + $0x30] sm:$0xff]
    %v67 = vld [vmem:[#allocation2 + $0x38] sm:$0xff]
    %v68 = vld [vmem:[#allocation2 + $0x40] sm:$0xff]
    %v69 = vld [vmem:[#allocation2 + $0x48] sm:$0xff]
    %v70 = vld [vmem:[#allocation2 + $0x50] sm:$0xff]
    %v71 = vld [vmem:[#allocation2 + $0x58] sm:$0xff]
    %v72 = vld [vmem:[#allocation2 + $0x60] sm:$0xff]
    %v73 = vld [vmem:[#allocation2 + $0x68] sm:$0xff]
    %v74 = vld [vmem:[#allocation2 + $0x70] sm:$0xff]
    %v75 = vld [vmem:[#allocation2 + $0x78] sm:$0xff]
    %v76 = vld [vmem:[#allocation2 + $0x80] sm:$0xff]
    %v77 = vld [vmem:[#allocation2 + $0x88] sm:$0xff]
    %v78 = vld [vmem:[#allocation2 + $0x90] sm:$0xff]
    %v79 = vld [vmem:[#allocation2 + $0x98] sm:$0xff]
    %v80 = vld [vmem:[#allocation2 + $0xa0] sm:$0xff]
    %v81 = vld [vmem:[#allocation2 + $0xa8] sm:$0xff]
    %v82 = vld [vmem:[#allocation2 + $0xb0] sm:$0xff]
    %v83 = vld [vmem:[#allocation2 + $0xb8] sm:$0xff]
    %v84 = vld [vmem:[#allocation2 + $0xc0] sm:$0xff]
    %v85 = vld [vmem:[#allocation2 + $0xc8] sm:$0xff]
    %v86 = vld [vmem:[#allocation2 + $0xd0] sm:$0xff]
    %v87 = vld [vmem:[#allocation2 + $0xd8] sm:$0xff]
    %v88 = vld [vmem:[#allocation2 + $0xe0] sm:$0xff]
    %v89 = vld [vmem:[#allocation2 + $0xe8] sm:$0xff]
    %v90 = vld [vmem:[#allocation2 + $0xf0] sm:$0xff]
    %v91 = vld [vmem:[#allocation2 + $0xf8] sm:$0xff]
    %v92 = vld [vmem:[%s3] sm:$0xff]
    %v93 = vpack.c.bf16 %v61, %v60
    %v94 = vpack.c.bf16 %v63, %v62
    %v95 = vpack.c.bf16 %v65, %v64
    %v96 = vpack.c.bf16 %v67, %v66
    %v97 = vpack.c.bf16 %v69, %v68
    %v98 = vpack.c.bf16 %v71, %v70
    %v99 = vpack.c.bf16 %v73, %v72
    %v100 = vpack.c.bf16 %v75, %v74
    %v101 = vpack.c.bf16 %v77, %v76
    %v102 = vpack.c.bf16 %v79, %v78
    %v103 = vpack.c.bf16 %v81, %v80
    %v104 = vpack.c.bf16 %v83, %v82
    %v105 = vpack.c.bf16 %v85, %v84
    %v106 = vpack.c.bf16 %v87, %v86
    %v107 = vpack.c.bf16 %v89, %v88
    %v108 = vpack.c.bf16 %v91, %v90
    %v109 = vld [vmem:[#allocation5] sm:$0xf]
    %v110 = vld [vmem:[#allocation5 + $0x4] sm:$0xf]
    %v111 = vld [vmem:[#allocation5 + $0x8] sm:$0xf]
    %v112 = vld [vmem:[#allocation5 + $0xc] sm:$0xf]
    %v113 = vld [vmem:[#allocation5 + $0x10] sm:$0xf]
    %v114 = vld [vmem:[#allocation5 + $0x14] sm:$0xf]
    %v115 = vld [vmem:[#allocation5 + $0x18] sm:$0xf]
    %v116 = vld [vmem:[#allocation5 + $0x1c] sm:$0xf]
    %v117 = vld [vmem:[#allocation5 + $0x20] sm:$0xf]
    %v118 = vld [vmem:[#allocation5 + $0x24] sm:$0xf]
    %v119 = vld [vmem:[#allocation5 + $0x28] sm:$0xf]
    %v120 = vld [vmem:[#allocation5 + $0x2c] sm:$0xf]
    %v121 = vld [vmem:[#allocation5 + $0x30] sm:$0xf]
    %v122 = vld [vmem:[#allocation5 + $0x34] sm:$0xf]
    %v123 = vld [vmem:[#allocation5 + $0x38] sm:$0xf]
    %v124 = vld [vmem:[#allocation5 + $0x3c] sm:$0xf]
    %v125 = vlaneseq
    %v126 = vshrl.u32 %v125, 7
    %v127 = vsub.s32 0, %v126
    %v128 = vrot.slane %v92, %v127
    %v145 = vunpack.c.l.b16 %v109
    %v146 = vunpack.c.l.b16 %v110
    %v147 = vunpack.c.l.b16 %v111
    %v148 = vunpack.c.l.b16 %v112
    %v149 = vunpack.c.l.b16 %v113
    %v150 = vunpack.c.l.b16 %v114
    %v151 = vunpack.c.l.b16 %v115
    %v152 = vunpack.c.l.b16 %v116
    %v153 = vunpack.c.l.b16 %v117
    %v154 = vunpack.c.l.b16 %v118
    %v155 = vunpack.c.l.b16 %v119
    %v156 = vunpack.c.l.b16 %v120
    %v157 = vunpack.c.l.b16 %v121
    %v158 = vunpack.c.l.b16 %v122
    %v159 = vunpack.c.l.b16 %v123
    %v160 = vunpack.c.l.b16 %v124
    %v161 = vpack.c.b16 %v146, %v145
    %v162 = vpack.c.b16 %v148, %v147
    %v163 = vpack.c.b16 %v150, %v149
    %v164 = vpack.c.b16 %v152, %v151
    %v165 = vpack.c.b16 %v154, %v153
    %v166 = vpack.c.b16 %v156, %v155
    %v167 = vpack.c.b16 %v158, %v157
    %v168 = vpack.c.b16 %v160, %v159
    %177 = vmatprep.subr.bf16.mxu0 0
    %178 = vmatpush1.bf16.msra.mxu0 %v161
    %179 = vmatprep.subr.bf16.mxu0 0
    %180 = vmatpush1.bf16.msra.mxu0 %v162
    %181 = vmatprep.subr.bf16.mxu0 0
    %182 = vmatpush1.bf16.msra.mxu0 %v163
    %183 = vmatprep.subr.bf16.mxu0 0
    %184 = vmatpush1.bf16.msra.mxu0 %v164
    %185 = vmatprep.subr.bf16.mxu0 0
    %186 = vmatpush1.bf16.msra.mxu0 %v165
    %187 = vmatprep.subr.bf16.mxu0 0
    %188 = vmatpush1.bf16.msra.mxu0 %v166
    %189 = vmatprep.subr.bf16.mxu0 0
    %190 = vmatpush1.bf16.msra.mxu0 %v167
    %191 = vmatprep.subr.bf16.mxu0 0
    %192 = vmatpush1.bf16.msra.mxu0 %v168
    %193 = vmatprep.subr.bf16.mxu0 0
    %194 = vmatpush1.bf16.msra.mxu0 0
    %195 = vmatprep.subr.bf16.mxu0 0
    %196 = vmatpush1.bf16.msra.mxu0 0
    %197 = vmatprep.subr.bf16.mxu0 0
    %198 = vmatpush1.bf16.msra.mxu0 0
    %199 = vmatprep.subr.bf16.mxu0 0
    %200 = vmatpush1.bf16.msra.mxu0 0
    %201 = vmatprep.subr.bf16.mxu0 0
    %202 = vmatpush1.bf16.msra.mxu0 0
    %203 = vmatprep.subr.bf16.mxu0 0
    %204 = vmatpush1.bf16.msra.mxu0 0
    %205 = vmatprep.subr.bf16.mxu0 0
    %206 = vmatpush1.bf16.msra.mxu0 0
    %207 = vmatprep.subr.bf16.mxu0 0
    %208 = vmatpush1.bf16.msra.mxu0 0
    %209 = vmatprep.mubr.bf16.mxu0 0
    %210 = vmatmul.mubr.bf16.gmra.mrb[0].mxu0 %v93
    %v211 = vpop.f32.mrb[0].mxu0
    %v212 = vadd.f32 %v128, %v211
    %v213 = vpop.f32.mrb[0].mxu0
    %v214 = vpop.f32.mrb[0].mxu0
    %v215 = vadd.f32 %v128, %v214
    %v216 = vpop.f32.mrb[0].mxu0
    %217 = vmatprep.mubr.bf16.mxu0 0
    %218 = vmatmul.mubr.bf16.gmra.mrb[0].mxu0 %v94
    %v219 = vpop.f32.mrb[0].mxu0
    %v220 = vadd.f32 %v128, %v219
    %v221 = vpop.f32.mrb[0].mxu0
    %v222 = vpop.f32.mrb[0].mxu0
    %v223 = vadd.f32 %v128, %v222
    %v224 = vpop.f32.mrb[0].mxu0
    %225 = vmatprep.mubr.bf16.mxu0 0
    %226 = vmatmul.mubr.bf16.gmra.mrb[0].mxu0 %v95
    %v227 = vpop.f32.mrb[0].mxu0
    %v228 = vadd.f32 %v128, %v227
    %v229 = vpop.f32.mrb[0].mxu0
    %v230 = vpop.f32.mrb[0].mxu0
    %v231 = vadd.f32 %v128, %v230
    %v232 = vpop.f32.mrb[0].mxu0
    %233 = vmatprep.mubr.bf16.mxu0 0
    %234 = vmatmul.mubr.bf16.gmra.mrb[0].mxu0 %v96
    %v235 = vpop.f32.mrb[0].mxu0
    %v236 = vadd.f32 %v128, %v235
    %v237 = vpop.f32.mrb[0].mxu0
    %v238 = vpop.f32.mrb[0].mxu0
    %v239 = vadd.f32 %v128, %v238
    %v240 = vpop.f32.mrb[0].mxu0
    %241 = vmatprep.mubr.bf16.mxu0 0
    %242 = vmatmul.mubr.bf16.gmra.mrb[0].mxu0 %v97
    %v243 = vpop.f32.mrb[0].mxu0
    %v244 = vadd.f32 %v128, %v243
    %v245 = vpop.f32.mrb[0].mxu0
    %v246 = vpop.f32.mrb[0].mxu0
    %v247 = vadd.f32 %v128, %v246
    %v248 = vpop.f32.mrb[0].mxu0
    %249 = vmatprep.mubr.bf16.mxu0 0
    %250 = vmatmul.mubr.bf16.gmra.mrb[0].mxu0 %v98
    %v251 = vpop.f32.mrb[0].mxu0
    %v252 = vadd.f32 %v128, %v251
    %v253 = vpop.f32.mrb[0].mxu0
    %v254 = vpop.f32.mrb[0].mxu0
    %v255 = vadd.f32 %v128, %v254
    %v256 = vpop.f32.mrb[0].mxu0
    %257 = vmatprep.mubr.bf16.mxu0 0
    %258 = vmatmul.mubr.bf16.gmra.mrb[0].mxu0 %v99
    %v259 = vpop.f32.mrb[0].mxu0
    %v260 = vadd.f32 %v128, %v259
    %v261 = vpop.f32.mrb[0].mxu0
    %v262 = vpop.f32.mrb[0].mxu0
    %v263 = vadd.f32 %v128, %v262
    %v264 = vpop.f32.mrb[0].mxu0
    %265 = vmatprep.mubr.bf16.mxu0 0
    %266 = vmatmul.mubr.bf16.gmra.mrb[0].mxu0 %v100
    %v267 = vpop.f32.mrb[0].mxu0
    %v268 = vadd.f32 %v128, %v267
    %v269 = vpop.f32.mrb[0].mxu0
    %v270 = vpop.f32.mrb[0].mxu0
    %v271 = vadd.f32 %v128, %v270
    %v272 = vpop.f32.mrb[0].mxu0
    %273 = vmatprep.mubr.bf16.mxu0 0
    %274 = vmatmul.mubr.bf16.gmra.mrb[0].mxu0 %v101
    %v275 = vpop.f32.mrb[0].mxu0
    %v276 = vadd.f32 %v128, %v275
    %v277 = vpop.f32.mrb[0].mxu0
    %v278 = vpop.f32.mrb[0].mxu0
    %v279 = vadd.f32 %v128, %v278
    %v280 = vpop.f32.mrb[0].mxu0
    %281 = vmatprep.mubr.bf16.mxu0 0
    %282 = vmatmul.mubr.bf16.gmra.mrb[0].mxu0 %v102
    %v283 = vpop.f32.mrb[0].mxu0
    %v284 = vadd.f32 %v128, %v283
    %v285 = vpop.f32.mrb[0].mxu0
    %v286 = vpop.f32.mrb[0].mxu0
    %v287 = vadd.f32 %v128, %v286
    %v288 = vpop.f32.mrb[0].mxu0
    %289 = vmatprep.mubr.bf16.mxu0 0
    %290 = vmatmul.mubr.bf16.gmra.mrb[0].mxu0 %v103
    %v291 = vpop.f32.mrb[0].mxu0
    %v292 = vadd.f32 %v128, %v291
    %v293 = vpop.f32.mrb[0].mxu0
    %v294 = vpop.f32.mrb[0].mxu0
    %v295 = vadd.f32 %v128, %v294
    %v296 = vpop.f32.mrb[0].mxu0
    %297 = vmatprep.mubr.bf16.mxu0 0
    %298 = vmatmul.mubr.bf16.gmra.mrb[0].mxu0 %v104
    %v299 = vpop.f32.mrb[0].mxu0
    %v300 = vadd.f32 %v128, %v299
    %v301 = vpop.f32.mrb[0].mxu0
    %v302 = vpop.f32.mrb[0].mxu0
    %v303 = vadd.f32 %v128, %v302
    %v304 = vpop.f32.mrb[0].mxu0
    %305 = vmatprep.mubr.bf16.mxu0 0
    %306 = vmatmul.mubr.bf16.gmra.mrb[0].mxu0 %v105
    %v307 = vpop.f32.mrb[0].mxu0
    %v308 = vadd.f32 %v128, %v307
    %v309 = vpop.f32.mrb[0].mxu0
    %v310 = vpop.f32.mrb[0].mxu0
    %v311 = vadd.f32 %v128, %v310
    %v312 = vpop.f32.mrb[0].mxu0
    %313 = vmatprep.mubr.bf16.mxu0 0
    %314 = vmatmul.mubr.bf16.gmra.mrb[0].mxu0 %v106
    %v315 = vpop.f32.mrb[0].mxu0
    %v316 = vadd.f32 %v128, %v315
    %v317 = vpop.f32.mrb[0].mxu0
    %v318 = vpop.f32.mrb[0].mxu0
    %v319 = vadd.f32 %v128, %v318
    %v320 = vpop.f32.mrb[0].mxu0
    %321 = vmatprep.mubr.bf16.mxu0 0
    %322 = vmatmul.mubr.bf16.gmra.mrb[0].mxu0 %v107
    %v323 = vpop.f32.mrb[0].mxu0
    %v324 = vadd.f32 %v128, %v323
    %v325 = vpop.f32.mrb[0].mxu0
    %v326 = vpop.f32.mrb[0].mxu0
    %v327 = vadd.f32 %v128, %v326
    %v328 = vpop.f32.mrb[0].mxu0
    %329 = vmatprep.mubr.bf16.mxu0 0
    %330 = vmatmul.mubr.bf16.gmra.mrb[0].mxu0 %v108
    %v331 = vpop.f32.mrb[0].mxu0
    %v332 = vadd.f32 %v128, %v331
    %v333 = vpop.f32.mrb[0].mxu0
    %v334 = vpop.f32.mrb[0].mxu0
    %v335 = vadd.f32 %v128, %v334
    %v336 = vpop.f32.mrb[0].mxu0
    %337 = vdwg.mxu0
    %v338 = vmax.f32 %v212, 0.0
    %v339 = vmax.f32 %v215, 0.0
    %v340 = vmax.f32 %v220, 0.0
    %v341 = vmax.f32 %v223, 0.0
    %v342 = vmax.f32 %v228, 0.0
    %v343 = vmax.f32 %v231, 0.0
    %v344 = vmax.f32 %v236, 0.0
    %v345 = vmax.f32 %v239, 0.0
    %v346 = vmax.f32 %v244, 0.0
    %v347 = vmax.f32 %v247, 0.0
    %v348 = vmax.f32 %v252, 0.0
    %v349 = vmax.f32 %v255, 0.0
    %v350 = vmax.f32 %v260, 0.0
    %v351 = vmax.f32 %v263, 0.0
    %v352 = vmax.f32 %v268, 0.0
    %v353 = vmax.f32 %v271, 0.0
    %v354 = vmax.f32 %v276, 0.0
    %v355 = vmax.f32 %v279, 0.0
    %v356 = vmax.f32 %v284, 0.0
    %v357 = vmax.f32 %v287, 0.0
    %v358 = vmax.f32 %v292, 0.0
    %v359 = vmax.f32 %v295, 0.0
    %v360 = vmax.f32 %v300, 0.0
    %v361 = vmax.f32 %v303, 0.0
    %v362 = vmax.f32 %v308, 0.0
    %v363 = vmax.f32 %v311, 0.0
    %v364 = vmax.f32 %v316, 0.0
    %v365 = vmax.f32 %v319, 0.0
    %v366 = vmax.f32 %v324, 0.0
    %v367 = vmax.f32 %v327, 0.0
    %v368 = vmax.f32 %v332, 0.0
    %v369 = vmax.f32 %v335, 0.0
    %v370 = vpack.c.bf16 %v339, %v338
    %v371 = vpack.c.bf16 %v341, %v340
    %v372 = vpack.c.bf16 %v343, %v342
    %v373 = vpack.c.bf16 %v345, %v344
    %v374 = vpack.c.bf16 %v347, %v346
    %v375 = vpack.c.bf16 %v349, %v348
    %v376 = vpack.c.bf16 %v351, %v350
    %v377 = vpack.c.bf16 %v353, %v352
    %v378 = vpack.c.bf16 %v355, %v354
    %v379 = vpack.c.bf16 %v357, %v356
    %v380 = vpack.c.bf16 %v359, %v358
    %v381 = vpack.c.bf16 %v361, %v360
    %v382 = vpack.c.bf16 %v363, %v362
    %v383 = vpack.c.bf16 %v365, %v364
    %v384 = vpack.c.bf16 %v367, %v366
    %v385 = vpack.c.bf16 %v369, %v368
    %v386 = vld [vmem:[#allocation7] sm:$0xf]
    %v387 = vld [vmem:[#allocation7 + $0x4] sm:$0xf]
    %v388 = vld [vmem:[#allocation7 + $0x8] sm:$0xf]
    %v389 = vld [vmem:[#allocation7 + $0xc] sm:$0xf]
    %v390 = vld [vmem:[#allocation7 + $0x10] sm:$0xf]
    %v391 = vld [vmem:[#allocation7 + $0x14] sm:$0xf]
    %v392 = vld [vmem:[#allocation7 + $0x18] sm:$0xf]
    %v393 = vld [vmem:[#allocation7 + $0x1c] sm:$0xf]
    %v394 = vld [vmem:[#allocation7 + $0x20] sm:$0xf]
    %v395 = vld [vmem:[#allocation7 + $0x24] sm:$0xf]
    %v396 = vld [vmem:[#allocation7 + $0x28] sm:$0xf]
    %v397 = vld [vmem:[#allocation7 + $0x2c] sm:$0xf]
    %v398 = vld [vmem:[#allocation7 + $0x30] sm:$0xf]
    %v399 = vld [vmem:[#allocation7 + $0x34] sm:$0xf]
    %v400 = vld [vmem:[#allocation7 + $0x38] sm:$0xf]
    %v401 = vld [vmem:[#allocation7 + $0x3c] sm:$0xf]
    %v402 = vlaneseq
    %v403 = vshrl.u32 %v402, 7
    %v404 = vsub.s32 1, %v403
    %v405 = vrot.slane %v92, %v404
    %v422 = vunpack.c.l.b16 %v386
    %v423 = vunpack.c.l.b16 %v387
    %v424 = vunpack.c.l.b16 %v388
    %v425 = vunpack.c.l.b16 %v389
    %v426 = vunpack.c.l.b16 %v390
    %v427 = vunpack.c.l.b16 %v391
    %v428 = vunpack.c.l.b16 %v392
    %v429 = vunpack.c.l.b16 %v393
    %v430 = vunpack.c.l.b16 %v394
    %v431 = vunpack.c.l.b16 %v395
    %v432 = vunpack.c.l.b16 %v396
    %v433 = vunpack.c.l.b16 %v397
    %v434 = vunpack.c.l.b16 %v398
    %v435 = vunpack.c.l.b16 %v399
    %v436 = vunpack.c.l.b16 %v400
    %v437 = vunpack.c.l.b16 %v401
    %v438 = vpack.c.b16 %v423, %v422
    %v439 = vpack.c.b16 %v425, %v424
    %v440 = vpack.c.b16 %v427, %v426
    %v441 = vpack.c.b16 %v429, %v428
    %v442 = vpack.c.b16 %v431, %v430
    %v443 = vpack.c.b16 %v433, %v432
    %v444 = vpack.c.b16 %v435, %v434
    %v445 = vpack.c.b16 %v437, %v436
    %454 = vmatprep.subr.bf16.mxu0 0
    %455 = vmatpush1.bf16.msra.mxu0 %v438
    %456 = vmatprep.subr.bf16.mxu0 0
    %457 = vmatpush1.bf16.msra.mxu0 %v439
    %458 = vmatprep.subr.bf16.mxu0 0
    %459 = vmatpush1.bf16.msra.mxu0 %v440
    %460 = vmatprep.subr.bf16.mxu0 0
    %461 = vmatpush1.bf16.msra.mxu0 %v441
    %462 = vmatprep.subr.bf16.mxu0 0
    %463 = vmatpush1.bf16.msra.mxu0 %v442
    %464 = vmatprep.subr.bf16.mxu0 0
    %465 = vmatpush1.bf16.msra.mxu0 %v443
    %466 = vmatprep.subr.bf16.mxu0 0
    %467 = vmatpush1.bf16.msra.mxu0 %v444
    %468 = vmatprep.subr.bf16.mxu0 0
    %469 = vmatpush1.bf16.msra.mxu0 %v445
    %470 = vmatprep.subr.bf16.mxu0 0
    %471 = vmatpush1.bf16.msra.mxu0 0
    %472 = vmatprep.subr.bf16.mxu0 0
    %473 = vmatpush1.bf16.msra.mxu0 0
    %474 = vmatprep.subr.bf16.mxu0 0
    %475 = vmatpush1.bf16.msra.mxu0 0
    %476 = vmatprep.subr.bf16.mxu0 0
    %477 = vmatpush1.bf16.msra.mxu0 0
    %478 = vmatprep.subr.bf16.mxu0 0
    %479 = vmatpush1.bf16.msra.mxu0 0
    %480 = vmatprep.subr.bf16.mxu0 0
    %481 = vmatpush1.bf16.msra.mxu0 0
    %482 = vmatprep.subr.bf16.mxu0 0
    %483 = vmatpush1.bf16.msra.mxu0 0
    %484 = vmatprep.subr.bf16.mxu0 0
    %485 = vmatpush1.bf16.msra.mxu0 0
    %486 = vmatprep.mubr.bf16.mxu0 0
    %487 = vmatmul.mubr.bf16.gmra.mrb[0].mxu0 %v370
    %v488 = vpop.f32.mrb[0].mxu0
    %v489 = vadd.f32 %v405, %v488
    %v490 = vpop.f32.mrb[0].mxu0
    %v491 = vpop.f32.mrb[0].mxu0
    %v492 = vadd.f32 %v405, %v491
    %v493 = vpop.f32.mrb[0].mxu0
    %494 = vmatprep.mubr.bf16.mxu0 0
    %495 = vmatmul.mubr.bf16.gmra.mrb[0].mxu0 %v371
    %v496 = vpop.f32.mrb[0].mxu0
    %v497 = vadd.f32 %v405, %v496
    %v498 = vpop.f32.mrb[0].mxu0
    %v499 = vpop.f32.mrb[0].mxu0
    %v500 = vadd.f32 %v405, %v499
    %v501 = vpop.f32.mrb[0].mxu0
    %502 = vmatprep.mubr.bf16.mxu0 0
    %503 = vmatmul.mubr.bf16.gmra.mrb[0].mxu0 %v372
    %v504 = vpop.f32.mrb[0].mxu0
    %v505 = vadd.f32 %v405, %v504
    %v506 = vpop.f32.mrb[0].mxu0
    %v507 = vpop.f32.mrb[0].mxu0
    %v508 = vadd.f32 %v405, %v507
    %v509 = vpop.f32.mrb[0].mxu0
    %510 = vmatprep.mubr.bf16.mxu0 0
    %511 = vmatmul.mubr.bf16.gmra.mrb[0].mxu0 %v373
    %v512 = vpop.f32.mrb[0].mxu0
    %v513 = vadd.f32 %v405, %v512
    %v514 = vpop.f32.mrb[0].mxu0
    %v515 = vpop.f32.mrb[0].mxu0
    %v516 = vadd.f32 %v405, %v515
    %v517 = vpop.f32.mrb[0].mxu0
    %518 = vmatprep.mubr.bf16.mxu0 0
    %519 = vmatmul.mubr.bf16.gmra.mrb[0].mxu0 %v374
    %v520 = vpop.f32.mrb[0].mxu0
    %v521 = vadd.f32 %v405, %v520
    %v522 = vpop.f32.mrb[0].mxu0
    %v523 = vpop.f32.mrb[0].mxu0
    %v524 = vadd.f32 %v405, %v523
    %v525 = vpop.f32.mrb[0].mxu0
    %526 = vmatprep.mubr.bf16.mxu0 0
    %527 = vmatmul.mubr.bf16.gmra.mrb[0].mxu0 %v375
    %v528 = vpop.f32.mrb[0].mxu0
    %v529 = vadd.f32 %v405, %v528
    %v530 = vpop.f32.mrb[0].mxu0
    %v531 = vpop.f32.mrb[0].mxu0
    %v532 = vadd.f32 %v405, %v531
    %v533 = vpop.f32.mrb[0].mxu0
    %534 = vmatprep.mubr.bf16.mxu0 0
    %535 = vmatmul.mubr.bf16.gmra.mrb[0].mxu0 %v376
    %v536 = vpop.f32.mrb[0].mxu0
    %v537 = vadd.f32 %v405, %v536
    %v538 = vpop.f32.mrb[0].mxu0
    %v539 = vpop.f32.mrb[0].mxu0
    %v540 = vadd.f32 %v405, %v539
    %v541 = vpop.f32.mrb[0].mxu0
    %542 = vmatprep.mubr.bf16.mxu0 0
    %543 = vmatmul.mubr.bf16.gmra.mrb[0].mxu0 %v377
    %v544 = vpop.f32.mrb[0].mxu0
    %v545 = vadd.f32 %v405, %v544
    %v546 = vpop.f32.mrb[0].mxu0
    %v547 = vpop.f32.mrb[0].mxu0
    %v548 = vadd.f32 %v405, %v547
    %v549 = vpop.f32.mrb[0].mxu0
    %550 = vmatprep.mubr.bf16.mxu0 0
    %551 = vmatmul.mubr.bf16.gmra.mrb[0].mxu0 %v378
    %v552 = vpop.f32.mrb[0].mxu0
    %v553 = vadd.f32 %v405, %v552
    %v554 = vpop.f32.mrb[0].mxu0
    %v555 = vpop.f32.mrb[0].mxu0
    %v556 = vadd.f32 %v405, %v555
    %v557 = vpop.f32.mrb[0].mxu0
    %558 = vmatprep.mubr.bf16.mxu0 0
    %559 = vmatmul.mubr.bf16.gmra.mrb[0].mxu0 %v379
    %v560 = vpop.f32.mrb[0].mxu0
    %v561 = vadd.f32 %v405, %v560
    %v562 = vpop.f32.mrb[0].mxu0
    %v563 = vpop.f32.mrb[0].mxu0
    %v564 = vadd.f32 %v405, %v563
    %v565 = vpop.f32.mrb[0].mxu0
    %566 = vmatprep.mubr.bf16.mxu0 0
    %567 = vmatmul.mubr.bf16.gmra.mrb[0].mxu0 %v380
    %v568 = vpop.f32.mrb[0].mxu0
    %v569 = vadd.f32 %v405, %v568
    %v570 = vpop.f32.mrb[0].mxu0
    %v571 = vpop.f32.mrb[0].mxu0
    %v572 = vadd.f32 %v405, %v571
    %v573 = vpop.f32.mrb[0].mxu0
    %574 = vmatprep.mubr.bf16.mxu0 0
    %575 = vmatmul.mubr.bf16.gmra.mrb[0].mxu0 %v381
    %v576 = vpop.f32.mrb[0].mxu0
    %v577 = vadd.f32 %v405, %v576
    %v578 = vpop.f32.mrb[0].mxu0
    %v579 = vpop.f32.mrb[0].mxu0
    %v580 = vadd.f32 %v405, %v579
    %v581 = vpop.f32.mrb[0].mxu0
    %582 = vmatprep.mubr.bf16.mxu0 0
    %583 = vmatmul.mubr.bf16.gmra.mrb[0].mxu0 %v382
    %v584 = vpop.f32.mrb[0].mxu0
    %v585 = vadd.f32 %v405, %v584
    %v586 = vpop.f32.mrb[0].mxu0
    %v587 = vpop.f32.mrb[0].mxu0
    %v588 = vadd.f32 %v405, %v587
    %v589 = vpop.f32.mrb[0].mxu0
    %590 = vmatprep.mubr.bf16.mxu0 0
    %591 = vmatmul.mubr.bf16.gmra.mrb[0].mxu0 %v383
    %v592 = vpop.f32.mrb[0].mxu0
    %v593 = vadd.f32 %v405, %v592
    %v594 = vpop.f32.mrb[0].mxu0
    %v595 = vpop.f32.mrb[0].mxu0
    %v596 = vadd.f32 %v405, %v595
    %v597 = vpop.f32.mrb[0].mxu0
    %598 = vmatprep.mubr.bf16.mxu0 0
    %599 = vmatmul.mubr.bf16.gmra.mrb[0].mxu0 %v384
    %v600 = vpop.f32.mrb[0].mxu0
    %v601 = vadd.f32 %v405, %v600
    %v602 = vpop.f32.mrb[0].mxu0
    %v603 = vpop.f32.mrb[0].mxu0
    %v604 = vadd.f32 %v405, %v603
    %v605 = vpop.f32.mrb[0].mxu0
    %606 = vmatprep.mubr.bf16.mxu0 0
    %607 = vmatmul.mubr.bf16.gmra.mrb[0].mxu0 %v385
    %v608 = vpop.f32.mrb[0].mxu0
    %v609 = vadd.f32 %v405, %v608
    %v610 = vpop.f32.mrb[0].mxu0
    %v611 = vpop.f32.mrb[0].mxu0
    %v612 = vadd.f32 %v405, %v611
    %v613 = vpop.f32.mrb[0].mxu0
    %614 = vdwg.mxu0
    %v615 = vadd.f32 %v489, %v60
    %v616 = vadd.f32 %v492, %v61
    %v617 = vadd.f32 %v497, %v62
    %v618 = vadd.f32 %v500, %v63
    %v619 = vadd.f32 %v505, %v64
    %v620 = vadd.f32 %v508, %v65
    %v621 = vadd.f32 %v513, %v66
    %v622 = vadd.f32 %v516, %v67
    %v623 = vadd.f32 %v521, %v68
    %v624 = vadd.f32 %v524, %v69
    %v625 = vadd.f32 %v529, %v70
    %v626 = vadd.f32 %v532, %v71
    %v627 = vadd.f32 %v537, %v72
    %v628 = vadd.f32 %v540, %v73
    %v629 = vadd.f32 %v545, %v74
    %v630 = vadd.f32 %v548, %v75
    %v631 = vadd.f32 %v553, %v76
    %v632 = vadd.f32 %v556, %v77
    %v633 = vadd.f32 %v561, %v78
    %v634 = vadd.f32 %v564, %v79
    %v635 = vadd.f32 %v569, %v80
    %v636 = vadd.f32 %v572, %v81
    %v637 = vadd.f32 %v577, %v82
    %v638 = vadd.f32 %v580, %v83
    %v639 = vadd.f32 %v585, %v84
    %v640 = vadd.f32 %v588, %v85
    %v641 = vadd.f32 %v593, %v86
    %v642 = vadd.f32 %v596, %v87
    %v643 = vadd.f32 %v601, %v88
    %v644 = vadd.f32 %v604, %v89
    %v645 = vadd.f32 %v609, %v90
    %v646 = vadd.f32 %v612, %v91
    %647 = vadd.xlane.f32.xlu0 %v615
    %v648 = vpop.xlane.xlu0 %647
    %649 = vadd.xlane.f32.xlu0 %v616
    %v650 = vpop.xlane.xlu0 %649
    %651 = vadd.xlane.f32.xlu0 %v617
    %v652 = vpop.xlane.xlu0 %651
    %653 = vadd.xlane.f32.xlu0 %v618
    %v654 = vpop.xlane.xlu0 %653
    %655 = vadd.xlane.f32.xlu0 %v619
    %v656 = vpop.xlane.xlu0 %655
    %657 = vadd.xlane.f32.xlu0 %v620
    %v658 = vpop.xlane.xlu0 %657
    %659 = vadd.xlane.f32.xlu0 %v621
    %v660 = vpop.xlane.xlu0 %659
    %661 = vadd.xlane.f32.xlu0 %v622
    %v662 = vpop.xlane.xlu0 %661
    %663 = vadd.xlane.f32.xlu0 %v623
    %v664 = vpop.xlane.xlu0 %663
    %665 = vadd.xlane.f32.xlu0 %v624
    %v666 = vpop.xlane.xlu0 %665
    %667 = vadd.xlane.f32.xlu0 %v625
    %v668 = vpop.xlane.xlu0 %667
    %669 = vadd.xlane.f32.xlu0 %v626
    %v670 = vpop.xlane.xlu0 %669
    %671 = vadd.xlane.f32.xlu0 %v627
    %v672 = vpop.xlane.xlu0 %671
    %673 = vadd.xlane.f32.xlu0 %v628
    %v674 = vpop.xlane.xlu0 %673
    %675 = vadd.xlane.f32.xlu0 %v629
    %v676 = vpop.xlane.xlu0 %675
    %677 = vadd.xlane.f32.xlu0 %v630
    %v678 = vpop.xlane.xlu0 %677
    %679 = vadd.xlane.f32.xlu0 %v631
    %v680 = vpop.xlane.xlu0 %679
    %681 = vadd.xlane.f32.xlu0 %v632
    %v682 = vpop.xlane.xlu0 %681
    %683 = vadd.xlane.f32.xlu0 %v633
    %v684 = vpop.xlane.xlu0 %683
    %685 = vadd.xlane.f32.xlu0 %v634
    %v686 = vpop.xlane.xlu0 %685
    %687 = vadd.xlane.f32.xlu0 %v635
    %v688 = vpop.xlane.xlu0 %687
    %689 = vadd.xlane.f32.xlu0 %v636
    %v690 = vpop.xlane.xlu0 %689
    %691 = vadd.xlane.f32.xlu0 %v637
    %v692 = vpop.xlane.xlu0 %691
    %693 = vadd.xlane.f32.xlu0 %v638
    %v694 = vpop.xlane.xlu0 %693
    %695 = vadd.xlane.f32.xlu0 %v639
    %v696 = vpop.xlane.xlu0 %695
    %697 = vadd.xlane.f32.xlu0 %v640
    %v698 = vpop.xlane.xlu0 %697
    %699 = vadd.xlane.f32.xlu0 %v641
    %v700 = vpop.xlane.xlu0 %699
    %701 = vadd.xlane.f32.xlu0 %v642
    %v702 = vpop.xlane.xlu0 %701
    %703 = vadd.xlane.f32.xlu0 %v643
    %v704 = vpop.xlane.xlu0 %703
    %705 = vadd.xlane.f32.xlu0 %v644
    %v706 = vpop.xlane.xlu0 %705
    %707 = vadd.xlane.f32.xlu0 %v645
    %v708 = vpop.xlane.xlu0 %707
    %709 = vadd.xlane.f32.xlu0 %v646
    %v710 = vpop.xlane.xlu0 %709
    %v711 = vmul.f32 %v648, 0.0078125
    %v712 = vmul.f32 %v650, 0.0078125
    %v713 = vmul.f32 %v652, 0.0078125
    %v714 = vmul.f32 %v654, 0.0078125
    %v715 = vmul.f32 %v656, 0.0078125
    %v716 = vmul.f32 %v658, 0.0078125
    %v717 = vmul.f32 %v660, 0.0078125
    %v718 = vmul.f32 %v662, 0.0078125
    %v719 = vmul.f32 %v664, 0.0078125
    %v720 = vmul.f32 %v666, 0.0078125
    %v721 = vmul.f32 %v668, 0.0078125
    %v722 = vmul.f32 %v670, 0.0078125
    %v723 = vmul.f32 %v672, 0.0078125
    %v724 = vmul.f32 %v674, 0.0078125
    %v725 = vmul.f32 %v676, 0.0078125
    %v726 = vmul.f32 %v678, 0.0078125
    %v727 = vmul.f32 %v680, 0.0078125
    %v728 = vmul.f32 %v682, 0.0078125
    %v729 = vmul.f32 %v684, 0.0078125
    %v730 = vmul.f32 %v686, 0.0078125
    %v731 = vmul.f32 %v688, 0.0078125
    %v732 = vmul.f32 %v690, 0.0078125
    %v733 = vmul.f32 %v692, 0.0078125
    %v734 = vmul.f32 %v694, 0.0078125
    %v735 = vmul.f32 %v696, 0.0078125
    %v736 = vmul.f32 %v698, 0.0078125
    %v737 = vmul.f32 %v700, 0.0078125
    %v738 = vmul.f32 %v702, 0.0078125
    %v739 = vmul.f32 %v704, 0.0078125
    %v740 = vmul.f32 %v706, 0.0078125
    %v741 = vmul.f32 %v708, 0.0078125
    %v742 = vmul.f32 %v710, 0.0078125
    %v743 = vmul.f32 %v615, %v615
    %v744 = vmul.f32 %v616, %v616
    %v745 = vmul.f32 %v617, %v617
    %v746 = vmul.f32 %v618, %v618
    %v747 = vmul.f32 %v619, %v619
    %v748 = vmul.f32 %v620, %v620
    %v749 = vmul.f32 %v621, %v621
    %v750 = vmul.f32 %v622, %v622
    %v751 = vmul.f32 %v623, %v623
    %v752 = vmul.f32 %v624, %v624
    %v753 = vmul.f32 %v625, %v625
    %v754 = vmul.f32 %v626, %v626
    %v755 = vmul.f32 %v627, %v627
    %v756 = vmul.f32 %v628, %v628
    %v757 = vmul.f32 %v629, %v629
    %v758 = vmul.f32 %v630, %v630
    %v759 = vmul.f32 %v631, %v631
    %v760 = vmul.f32 %v632, %v632
    %v761 = vmul.f32 %v633, %v633
    %v762 = vmul.f32 %v634, %v634
    %v763 = vmul.f32 %v635, %v635
    %v764 = vmul.f32 %v636, %v636
    %v765 = vmul.f32 %v637, %v637
    %v766 = vmul.f32 %v638, %v638
    %v767 = vmul.f32 %v639, %v639
    %v768 = vmul.f32 %v640, %v640
    %v769 = vmul.f32 %v641, %v641
    %v770 = vmul.f32 %v642, %v642
    %v771 = vmul.f32 %v643, %v643
    %v772 = vmul.f32 %v644, %v644
    %v773 = vmul.f32 %v645, %v645
    %v774 = vmul.f32 %v646, %v646
    %775 = vadd.xlane.f32.xlu0 %v743
    %v776 = vpop.xlane.xlu0 %775
    %777 = vadd.xlane.f32.xlu0 %v744
    %v778 = vpop.xlane.xlu0 %777
    %779 = vadd.xlane.f32.xlu0 %v745
    %v780 = vpop.xlane.xlu0 %779
    %781 = vadd.xlane.f32.xlu0 %v746
    %v782 = vpop.xlane.xlu0 %781
    %783 = vadd.xlane.f32.xlu0 %v747
    %v784 = vpop.xlane.xlu0 %783
    %785 = vadd.xlane.f32.xlu0 %v748
    %v786 = vpop.xlane.xlu0 %785
    %787 = vadd.xlane.f32.xlu0 %v749
    %v788 = vpop.xlane.xlu0 %787
    %789 = vadd.xlane.f32.xlu0 %v750
    %v790 = vpop.xlane.xlu0 %789
    %791 = vadd.xlane.f32.xlu0 %v751
    %v792 = vpop.xlane.xlu0 %791
    %793 = vadd.xlane.f32.xlu0 %v752
    %v794 = vpop.xlane.xlu0 %793
    %795 = vadd.xlane.f32.xlu0 %v753
    %v796 = vpop.xlane.xlu0 %795
    %797 = vadd.xlane.f32.xlu0 %v754
    %v798 = vpop.xlane.xlu0 %797
    %799 = vadd.xlane.f32.xlu0 %v755
    %v800 = vpop.xlane.xlu0 %799
    %801 = vadd.xlane.f32.xlu0 %v756
    %v802 = vpop.xlane.xlu0 %801
    %803 = vadd.xlane.f32.xlu0 %v757
    %v804 = vpop.xlane.xlu0 %803
    %805 = vadd.xlane.f32.xlu0 %v758
    %v806 = vpop.xlane.xlu0 %805
    %807 = vadd.xlane.f32.xlu0 %v759
    %v808 = vpop.xlane.xlu0 %807
    %809 = vadd.xlane.f32.xlu0 %v760
    %v810 = vpop.xlane.xlu0 %809
    %811 = vadd.xlane.f32.xlu0 %v761
    %v812 = vpop.xlane.xlu0 %811
    %813 = vadd.xlane.f32.xlu0 %v762
    %v814 = vpop.xlane.xlu0 %813
    %815 = vadd.xlane.f32.xlu0 %v763
    %v816 = vpop.xlane.xlu0 %815
    %817 = vadd.xlane.f32.xlu0 %v764
    %v818 = vpop.xlane.xlu0 %817
    %819 = vadd.xlane.f32.xlu0 %v765
    %v820 = vpop.xlane.xlu0 %819
    %821 = vadd.xlane.f32.xlu0 %v766
    %v822 = vpop.xlane.xlu0 %821
    %823 = vadd.xlane.f32.xlu0 %v767
    %v824 = vpop.xlane.xlu0 %823
    %825 = vadd.xlane.f32.xlu0 %v768
    %v826 = vpop.xlane.xlu0 %825
    %827 = vadd.xlane.f32.xlu0 %v769
    %v828 = vpop.xlane.xlu0 %827
    %829 = vadd.xlane.f32.xlu0 %v770
    %v830 = vpop.xlane.xlu0 %829
    %831 = vadd.xlane.f32.xlu0 %v771
    %v832 = vpop.xlane.xlu0 %831
    %833 = vadd.xlane.f32.xlu0 %v772
    %v834 = vpop.xlane.xlu0 %833
    %835 = vadd.xlane.f32.xlu0 %v773
    %v836 = vpop.xlane.xlu0 %835
    %837 = vadd.xlane.f32.xlu0 %v774
    %v838 = vpop.xlane.xlu0 %837
    %v839 = vmul.f32 %v776, 0.0078125
    %v840 = vmul.f32 %v778, 0.0078125
    %v841 = vmul.f32 %v780, 0.0078125
    %v842 = vmul.f32 %v782, 0.0078125
    %v843 = vmul.f32 %v784, 0.0078125
    %v844 = vmul.f32 %v786, 0.0078125
    %v845 = vmul.f32 %v788, 0.0078125
    %v846 = vmul.f32 %v790, 0.0078125
    %v847 = vmul.f32 %v792, 0.0078125
    %v848 = vmul.f32 %v794, 0.0078125
    %v849 = vmul.f32 %v796, 0.0078125
    %v850 = vmul.f32 %v798, 0.0078125
    %v851 = vmul.f32 %v800, 0.0078125
    %v852 = vmul.f32 %v802, 0.0078125
    %v853 = vmul.f32 %v804, 0.0078125
    %v854 = vmul.f32 %v806, 0.0078125
    %v855 = vmul.f32 %v808, 0.0078125
    %v856 = vmul.f32 %v810, 0.0078125
    %v857 = vmul.f32 %v812, 0.0078125
    %v858 = vmul.f32 %v814, 0.0078125
    %v859 = vmul.f32 %v816, 0.0078125
    %v860 = vmul.f32 %v818, 0.0078125
    %v861 = vmul.f32 %v820, 0.0078125
    %v862 = vmul.f32 %v822, 0.0078125
    %v863 = vmul.f32 %v824, 0.0078125
    %v864 = vmul.f32 %v826, 0.0078125
    %v865 = vmul.f32 %v828, 0.0078125
    %v866 = vmul.f32 %v830, 0.0078125
    %v867 = vmul.f32 %v832, 0.0078125
    %v868 = vmul.f32 %v834, 0.0078125
    %v869 = vmul.f32 %v836, 0.0078125
    %v870 = vmul.f32 %v838, 0.0078125
    %v871 = vmul.f32 %v711, %v711
    %v872 = vmul.f32 %v712, %v712
    %v873 = vmul.f32 %v713, %v713
    %v874 = vmul.f32 %v714, %v714
    %v875 = vmul.f32 %v715, %v715
    %v876 = vmul.f32 %v716, %v716
    %v877 = vmul.f32 %v717, %v717
    %v878 = vmul.f32 %v718, %v718
    %v879 = vmul.f32 %v719, %v719
    %v880 = vmul.f32 %v720, %v720
    %v881 = vmul.f32 %v721, %v721
    %v882 = vmul.f32 %v722, %v722
    %v883 = vmul.f32 %v723, %v723
    %v884 = vmul.f32 %v724, %v724
    %v885 = vmul.f32 %v725, %v725
    %v886 = vmul.f32 %v726, %v726
    %v887 = vmul.f32 %v727, %v727
    %v888 = vmul.f32 %v728, %v728
    %v889 = vmul.f32 %v729, %v729
    %v890 = vmul.f32 %v730, %v730
    %v891 = vmul.f32 %v731, %v731
    %v892 = vmul.f32 %v732, %v732
    %v893 = vmul.f32 %v733, %v733
    %v894 = vmul.f32 %v734, %v734
    %v895 = vmul.f32 %v735, %v735
    %v896 = vmul.f32 %v736, %v736
    %v897 = vmul.f32 %v737, %v737
    %v898 = vmul.f32 %v738, %v738
    %v899 = vmul.f32 %v739, %v739
    %v900 = vmul.f32 %v740, %v740
    %v901 = vmul.f32 %v741, %v741
    %v902 = vmul.f32 %v742, %v742
    %v903 = vsub.f32 %v839, %v871
    %v904 = vsub.f32 %v840, %v872
    %v905 = vsub.f32 %v841, %v873
    %v906 = vsub.f32 %v842, %v874
    %v907 = vsub.f32 %v843, %v875
    %v908 = vsub.f32 %v844, %v876
    %v909 = vsub.f32 %v845, %v877
    %v910 = vsub.f32 %v846, %v878
    %v911 = vsub.f32 %v847, %v879
    %v912 = vsub.f32 %v848, %v880
    %v913 = vsub.f32 %v849, %v881
    %v914 = vsub.f32 %v850, %v882
    %v915 = vsub.f32 %v851, %v883
    %v916 = vsub.f32 %v852, %v884
    %v917 = vsub.f32 %v853, %v885
    %v918 = vsub.f32 %v854, %v886
    %v919 = vsub.f32 %v855, %v887
    %v920 = vsub.f32 %v856, %v888
    %v921 = vsub.f32 %v857, %v889
    %v922 = vsub.f32 %v858, %v890
    %v923 = vsub.f32 %v859, %v891
    %v924 = vsub.f32 %v860, %v892
    %v925 = vsub.f32 %v861, %v893
    %v926 = vsub.f32 %v862, %v894
    %v927 = vsub.f32 %v863, %v895
    %v928 = vsub.f32 %v864, %v896
    %v929 = vsub.f32 %v865, %v897
    %v930 = vsub.f32 %v866, %v898
    %v931 = vsub.f32 %v867, %v899
    %v932 = vsub.f32 %v868, %v900
    %v933 = vsub.f32 %v869, %v901
    %v934 = vsub.f32 %v870, %v902
    %v935 = vmax.f32 %v903, 0.0
    %v936 = vmax.f32 %v904, 0.0
    %v937 = vmax.f32 %v905, 0.0
    %v938 = vmax.f32 %v906, 0.0
    %v939 = vmax.f32 %v907, 0.0
    %v940 = vmax.f32 %v908, 0.0
    %v941 = vmax.f32 %v909, 0.0
    %v942 = vmax.f32 %v910, 0.0
    %v943 = vmax.f32 %v911, 0.0
    %v944 = vmax.f32 %v912, 0.0
    %v945 = vmax.f32 %v913, 0.0
    %v946 = vmax.f32 %v914, 0.0
    %v947 = vmax.f32 %v915, 0.0
    %v948 = vmax.f32 %v916, 0.0
    %v949 = vmax.f32 %v917, 0.0
    %v950 = vmax.f32 %v918, 0.0
    %v951 = vmax.f32 %v919, 0.0
    %v952 = vmax.f32 %v920, 0.0
    %v953 = vmax.f32 %v921, 0.0
    %v954 = vmax.f32 %v922, 0.0
    %v955 = vmax.f32 %v923, 0.0
    %v956 = vmax.f32 %v924, 0.0
    %v957 = vmax.f32 %v925, 0.0
    %v958 = vmax.f32 %v926, 0.0
    %v959 = vmax.f32 %v927, 0.0
    %v960 = vmax.f32 %v928, 0.0
    %v961 = vmax.f32 %v929, 0.0
    %v962 = vmax.f32 %v930, 0.0
    %v963 = vmax.f32 %v931, 0.0
    %v964 = vmax.f32 %v932, 0.0
    %v965 = vmax.f32 %v933, 0.0
    %v966 = vmax.f32 %v934, 0.0
    %v967 = vadd.f32 %v935, 1e-05
    %v968 = vadd.f32 %v936, 1e-05
    %v969 = vadd.f32 %v937, 1e-05
    %v970 = vadd.f32 %v938, 1e-05
    %v971 = vadd.f32 %v939, 1e-05
    %v972 = vadd.f32 %v940, 1e-05
    %v973 = vadd.f32 %v941, 1e-05
    %v974 = vadd.f32 %v942, 1e-05
    %v975 = vadd.f32 %v943, 1e-05
    %v976 = vadd.f32 %v944, 1e-05
    %v977 = vadd.f32 %v945, 1e-05
    %v978 = vadd.f32 %v946, 1e-05
    %v979 = vadd.f32 %v947, 1e-05
    %v980 = vadd.f32 %v948, 1e-05
    %v981 = vadd.f32 %v949, 1e-05
    %v982 = vadd.f32 %v950, 1e-05
    %v983 = vadd.f32 %v951, 1e-05
    %v984 = vadd.f32 %v952, 1e-05
    %v985 = vadd.f32 %v953, 1e-05
    %v986 = vadd.f32 %v954, 1e-05
    %v987 = vadd.f32 %v955, 1e-05
    %v988 = vadd.f32 %v956, 1e-05
    %v989 = vadd.f32 %v957, 1e-05
    %v990 = vadd.f32 %v958, 1e-05
    %v991 = vadd.f32 %v959, 1e-05
    %v992 = vadd.f32 %v960, 1e-05
    %v993 = vadd.f32 %v961, 1e-05
    %v994 = vadd.f32 %v962, 1e-05
    %v995 = vadd.f32 %v963, 1e-05
    %v996 = vadd.f32 %v964, 1e-05
    %v997 = vadd.f32 %v965, 1e-05
    %v998 = vadd.f32 %v966, 1e-05
    %v999 = vrsqrt.pop %v967
    %v1000 = vrsqrt.pop %v968
    %v1001 = vrsqrt.pop %v969
    %v1002 = vrsqrt.pop %v970
    %v1003 = vrsqrt.pop %v971
    %v1004 = vrsqrt.pop %v972
    %v1005 = vrsqrt.pop %v973
    %v1006 = vrsqrt.pop %v974
    %v1007 = vrsqrt.pop %v975
    %v1008 = vrsqrt.pop %v976
    %v1009 = vrsqrt.pop %v977
    %v1010 = vrsqrt.pop %v978
    %v1011 = vrsqrt.pop %v979
    %v1012 = vrsqrt.pop %v980
    %v1013 = vrsqrt.pop %v981
    %v1014 = vrsqrt.pop %v982
    %v1015 = vrsqrt.pop %v983
    %v1016 = vrsqrt.pop %v984
    %v1017 = vrsqrt.pop %v985
    %v1018 = vrsqrt.pop %v986
    %v1019 = vrsqrt.pop %v987
    %v1020 = vrsqrt.pop %v988
    %v1021 = vrsqrt.pop %v989
    %v1022 = vrsqrt.pop %v990
    %v1023 = vrsqrt.pop %v991
    %v1024 = vrsqrt.pop %v992
    %v1025 = vrsqrt.pop %v993
    %v1026 = vrsqrt.pop %v994
    %v1027 = vrsqrt.pop %v995
    %v1028 = vrsqrt.pop %v996
    %v1029 = vrsqrt.pop %v997
    %v1030 = vrsqrt.pop %v998
    %v1031 = vsub.f32 %v615, %v711
    %v1032 = vsub.f32 %v616, %v712
    %v1033 = vsub.f32 %v617, %v713
    %v1034 = vsub.f32 %v618, %v714
    %v1035 = vsub.f32 %v619, %v715
    %v1036 = vsub.f32 %v620, %v716
    %v1037 = vsub.f32 %v621, %v717
    %v1038 = vsub.f32 %v622, %v718
    %v1039 = vsub.f32 %v623, %v719
    %v1040 = vsub.f32 %v624, %v720
    %v1041 = vsub.f32 %v625, %v721
    %v1042 = vsub.f32 %v626, %v722
    %v1043 = vsub.f32 %v627, %v723
    %v1044 = vsub.f32 %v628, %v724
    %v1045 = vsub.f32 %v629, %v725
    %v1046 = vsub.f32 %v630, %v726
    %v1047 = vsub.f32 %v631, %v727
    %v1048 = vsub.f32 %v632, %v728
    %v1049 = vsub.f32 %v633, %v729
    %v1050 = vsub.f32 %v634, %v730
    %v1051 = vsub.f32 %v635, %v731
    %v1052 = vsub.f32 %v636, %v732
    %v1053 = vsub.f32 %v637, %v733
    %v1054 = vsub.f32 %v638, %v734
    %v1055 = vsub.f32 %v639, %v735
    %v1056 = vsub.f32 %v640, %v736
    %v1057 = vsub.f32 %v641, %v737
    %v1058 = vsub.f32 %v642, %v738
    %v1059 = vsub.f32 %v643, %v739
    %v1060 = vsub.f32 %v644, %v740
    %v1061 = vsub.f32 %v645, %v741
    %v1062 = vsub.f32 %v646, %v742
    %v1063 = vmul.f32 %v1031, %v999
    %v1064 = vmul.f32 %v1032, %v1000
    %v1065 = vmul.f32 %v1033, %v1001
    %v1066 = vmul.f32 %v1034, %v1002
    %v1067 = vmul.f32 %v1035, %v1003
    %v1068 = vmul.f32 %v1036, %v1004
    %v1069 = vmul.f32 %v1037, %v1005
    %v1070 = vmul.f32 %v1038, %v1006
    %v1071 = vmul.f32 %v1039, %v1007
    %v1072 = vmul.f32 %v1040, %v1008
    %v1073 = vmul.f32 %v1041, %v1009
    %v1074 = vmul.f32 %v1042, %v1010
    %v1075 = vmul.f32 %v1043, %v1011
    %v1076 = vmul.f32 %v1044, %v1012
    %v1077 = vmul.f32 %v1045, %v1013
    %v1078 = vmul.f32 %v1046, %v1014
    %v1079 = vmul.f32 %v1047, %v1015
    %v1080 = vmul.f32 %v1048, %v1016
    %v1081 = vmul.f32 %v1049, %v1017
    %v1082 = vmul.f32 %v1050, %v1018
    %v1083 = vmul.f32 %v1051, %v1019
    %v1084 = vmul.f32 %v1052, %v1020
    %v1085 = vmul.f32 %v1053, %v1021
    %v1086 = vmul.f32 %v1054, %v1022
    %v1087 = vmul.f32 %v1055, %v1023
    %v1088 = vmul.f32 %v1056, %v1024
    %v1089 = vmul.f32 %v1057, %v1025
    %v1090 = vmul.f32 %v1058, %v1026
    %v1091 = vmul.f32 %v1059, %v1027
    %v1092 = vmul.f32 %v1060, %v1028
    %v1093 = vmul.f32 %v1061, %v1029
    %v1094 = vmul.f32 %v1062, %v1030
    %v1095 = vlaneseq
    %v1096 = vshrl.u32 %v1095, 7
    %v1097 = vsub.s32 2, %v1096
    %v1098 = vrot.slane %v92, %v1097
    %v1099 = vmul.f32 %v1063, %v1098
    %v1100 = vmul.f32 %v1064, %v1098
    %v1101 = vmul.f32 %v1065, %v1098
    %v1102 = vmul.f32 %v1066, %v1098
    %v1103 = vmul.f32 %v1067, %v1098
    %v1104 = vmul.f32 %v1068, %v1098
    %v1105 = vmul.f32 %v1069, %v1098
    %v1106 = vmul.f32 %v1070, %v1098
    %v1107 = vmul.f32 %v1071, %v1098
    %v1108 = vmul.f32 %v1072, %v1098
    %v1109 = vmul.f32 %v1073, %v1098
    %v1110 = vmul.f32 %v1074, %v1098
    %v1111 = vmul.f32 %v1075, %v1098
    %v1112 = vmul.f32 %v1076, %v1098
    %v1113 = vmul.f32 %v1077, %v1098
    %v1114 = vmul.f32 %v1078, %v1098
    %v1115 = vmul.f32 %v1079, %v1098
    %v1116 = vmul.f32 %v1080, %v1098
    %v1117 = vmul.f32 %v1081, %v1098
    %v1118 = vmul.f32 %v1082, %v1098
    %v1119 = vmul.f32 %v1083, %v1098
    %v1120 = vmul.f32 %v1084, %v1098
    %v1121 = vmul.f32 %v1085, %v1098
    %v1122 = vmul.f32 %v1086, %v1098
    %v1123 = vmul.f32 %v1087, %v1098
    %v1124 = vmul.f32 %v1088, %v1098
    %v1125 = vmul.f32 %v1089, %v1098
    %v1126 = vmul.f32 %v1090, %v1098
    %v1127 = vmul.f32 %v1091, %v1098
    %v1128 = vmul.f32 %v1092, %v1098
    %v1129 = vmul.f32 %v1093, %v1098
    %v1130 = vmul.f32 %v1094, %v1098
    %v1131 = vlaneseq
    %v1132 = vshrl.u32 %v1131, 7
    %v1133 = vsub.s32 3, %v1132
    %v1134 = vrot.slane %v92, %v1133
    %v1135 = vadd.f32 %v1099, %v1134
    %v1136 = vadd.f32 %v1100, %v1134
    %v1137 = vadd.f32 %v1101, %v1134
    %v1138 = vadd.f32 %v1102, %v1134
    %v1139 = vadd.f32 %v1103, %v1134
    %v1140 = vadd.f32 %v1104, %v1134
    %v1141 = vadd.f32 %v1105, %v1134
    %v1142 = vadd.f32 %v1106, %v1134
    %v1143 = vadd.f32 %v1107, %v1134
    %v1144 = vadd.f32 %v1108, %v1134
    %v1145 = vadd.f32 %v1109, %v1134
    %v1146 = vadd.f32 %v1110, %v1134
    %v1147 = vadd.f32 %v1111, %v1134
    %v1148 = vadd.f32 %v1112, %v1134
    %v1149 = vadd.f32 %v1113, %v1134
    %v1150 = vadd.f32 %v1114, %v1134
    %v1151 = vadd.f32 %v1115, %v1134
    %v1152 = vadd.f32 %v1116, %v1134
    %v1153 = vadd.f32 %v1117, %v1134
    %v1154 = vadd.f32 %v1118, %v1134
    %v1155 = vadd.f32 %v1119, %v1134
    %v1156 = vadd.f32 %v1120, %v1134
    %v1157 = vadd.f32 %v1121, %v1134
    %v1158 = vadd.f32 %v1122, %v1134
    %v1159 = vadd.f32 %v1123, %v1134
    %v1160 = vadd.f32 %v1124, %v1134
    %v1161 = vadd.f32 %v1125, %v1134
    %v1162 = vadd.f32 %v1126, %v1134
    %v1163 = vadd.f32 %v1127, %v1134
    %v1164 = vadd.f32 %v1128, %v1134
    %v1165 = vadd.f32 %v1129, %v1134
    %v1166 = vadd.f32 %v1130, %v1134
    %1167 = vst [vmem:[#allocation8] sm:$0xff] %v1135
    %1168 = vst [vmem:[#allocation8 + $0x8] sm:$0xff] %v1136
    %1169 = vst [vmem:[#allocation8 + $0x10] sm:$0xff] %v1137
    %1170 = vst [vmem:[#allocation8 + $0x18] sm:$0xff] %v1138
    %1171 = vst [vmem:[#allocation8 + $0x20] sm:$0xff] %v1139
    %1172 = vst [vmem:[#allocation8 + $0x28] sm:$0xff] %v1140
    %1173 = vst [vmem:[#allocation8 + $0x30] sm:$0xff] %v1141
    %1174 = vst [vmem:[#allocation8 + $0x38] sm:$0xff] %v1142
    %1175 = vst [vmem:[#allocation8 + $0x40] sm:$0xff] %v1143
    %1176 = vst [vmem:[#allocation8 + $0x48] sm:$0xff] %v1144
    %1177 = vst [vmem:[#allocation8 + $0x50] sm:$0xff] %v1145
    %1178 = vst [vmem:[#allocation8 + $0x58] sm:$0xff] %v1146
    %1179 = vst [vmem:[#allocation8 + $0x60] sm:$0xff] %v1147
    %1180 = vst [vmem:[#allocation8 + $0x68] sm:$0xff] %v1148
    %1181 = vst [vmem:[#allocation8 + $0x70] sm:$0xff] %v1149
    %1182 = vst [vmem:[#allocation8 + $0x78] sm:$0xff] %v1150
    %1183 = vst [vmem:[#allocation8 + $0x80] sm:$0xff] %v1151
    %1184 = vst [vmem:[#allocation8 + $0x88] sm:$0xff] %v1152
    %1185 = vst [vmem:[#allocation8 + $0x90] sm:$0xff] %v1153
    %1186 = vst [vmem:[#allocation8 + $0x98] sm:$0xff] %v1154
    %1187 = vst [vmem:[#allocation8 + $0xa0] sm:$0xff] %v1155
    %1188 = vst [vmem:[#allocation8 + $0xa8] sm:$0xff] %v1156
    %1189 = vst [vmem:[#allocation8 + $0xb0] sm:$0xff] %v1157
    %1190 = vst [vmem:[#allocation8 + $0xb8] sm:$0xff] %v1158
    %1191 = vst [vmem:[#allocation8 + $0xc0] sm:$0xff] %v1159
    %1192 = vst [vmem:[#allocation8 + $0xc8] sm:$0xff] %v1160
    %1193 = vst [vmem:[#allocation8 + $0xd0] sm:$0xff] %v1161
    %1194 = vst [vmem:[#allocation8 + $0xd8] sm:$0xff] %v1162
    %1195 = vst [vmem:[#allocation8 + $0xe0] sm:$0xff] %v1163
    %1196 = vst [vmem:[#allocation8 + $0xe8] sm:$0xff] %v1164
    %1197 = vst [vmem:[#allocation8 + $0xf0] sm:$0xff] %v1165
    %1198 = vst [vmem:[#allocation8 + $0xf8] sm:$0xff] %v1166
    // Predicated region
    $region30: #{tpu_custom_call.1} parent=1 // pred_check
      _
    $region31: #{tpu_custom_call.1} parent=1 // pred_check_branch
      %1200 = sbr.rel (0) target = $region33
    $region32: #{tpu_custom_call.1} parent=1 // pred_region
      %s1202 = ssub.s32 4096, 4096
      %1203 = vsyncadd [#allocation4], %s1202
      %s1204 = sshll.u32 [#allocation8], 4
      %s1205 = int_to_ptr.vmem [resolvable:$true] %s1204
      %1210 = dma.vmem_to_hbm [thread:$0]  %s1205, 4096, %s4, [#allocation4], 128, 128, 8
    $region33: #{tpu_custom_call.1} parent=1 // pred_fallthru
      _
    // Predicated region
    $region34: #{tpu_custom_call.1} parent=1 // pred_check
      _
    $region35: #{tpu_custom_call.1} parent=1 // pred_check_branch
      %1212 = sbr.rel (0) target = $region37
    $region36: #{tpu_custom_call.1} parent=1 // pred_region
      %1213 = dma.done [#allocation4], 4096
    $region37: #{tpu_custom_call.1} parent=1 // pred_fallthru
      _
    %1214 = vsyncpa [#allocation3], 1
    %1215 = vsyncpa [#allocation6], 1
    %1216 = vsyncpa [#allocation4], 1

</llo_original>
